<compile_context>
chip_gen: v7x
topology: tpu7x:2x2x1
jax: 0.10.0
libtpu: 0.0.40
codegen_flags: <defaults>
</compile_context>

<pallas_src>
import jax
import jax.numpy as jnp
from jax.experimental import pallas as pl
from jax.experimental.pallas import tpu as pltpu


def lstm_logsoftmax_kernel(x_ref, wih_ref, whh_ref, b_ref, out_ref, gx_ref):
    """One invocation per batch tile; the full time recurrence runs inside.

    x_ref   : (S, Bt, E)   bf16  embedded inputs, all timesteps of this batch tile
    wih_ref : (E, 4H)      bf16  W_ih^T
    whh_ref : (H, 4H)      bf16  W_hh^T
    b_ref   : (1, 4H)      f32   b_ih + b_hh
    out_ref : (S, Bt, H)   f32   log_softmax(h_t) over H  (H == OUTPUT_DIM)
    gx_ref  : (S*Bt, 4H)   f32   VMEM scratch: precomputed input-projection gates
    """
    S, Bt, E = x_ref.shape
    H = whh_ref.shape[0]

    # ---- Phase 1: hoisted input projection (one big MXU matmul, bias folded) ----
    x2d = x_ref[...].reshape(S * Bt, E)
    gx_ref[...] = (
        jnp.dot(x2d, wih_ref[...], preferred_element_type=jnp.float32)
        + b_ref[...]
    )

    def sigmoid(v):
        # divide -> EUP approx reciprocal; exp already uses the EUP slot
        return pl.reciprocal(1.0 + jnp.exp(-v), approx=True)

    # ---- Phase 2: serial recurrence; only h_prev @ W_hh^T per step --------------
    def step(t, carry):
        h_prev, c_prev = carry
        off = pl.multiple_of(t * Bt, Bt)
        gates = gx_ref[pl.ds(off, Bt), :] + jnp.dot(
            h_prev.astype(jnp.bfloat16), whh_ref[...],
            preferred_element_type=jnp.float32)                  # (Bt, 4H)

        # PyTorch gate order: i, f, g, o
        i_g = sigmoid(gates[:, 0 * H:1 * H])
        f_g = sigmoid(gates[:, 1 * H:2 * H])
        g_g = jnp.tanh(gates[:, 2 * H:3 * H])
        o_g = sigmoid(gates[:, 3 * H:4 * H])

        c_new = f_g * c_prev + i_g * g_g
        h_new = o_g * jnp.tanh(c_new)

        # log_softmax over the hidden (= OUTPUT_DIM) dimension
        m = jnp.max(h_new, axis=-1, keepdims=True)
        shifted = h_new - m
        lse = jnp.log(jnp.sum(jnp.exp(shifted), axis=-1, keepdims=True))
        out_ref[t] = shifted - lse
        return h_new, c_new

    h0 = jnp.zeros((Bt, H), jnp.float32)
    c0 = jnp.zeros((Bt, H), jnp.float32)
    jax.lax.fori_loop(0, S, step, (h0, c0))


def rnn_forward(tokens, emb_table, w_ih, w_hh, b_ih, b_hh, batch_size):
    """tokens: (seq_len, batch) int32 token ids (time-major, like torchtext)."""
    seq, batch = tokens.shape
    E = emb_table.shape[1]
    H = w_hh.shape[1]

    # Embedding lookup (plain-JAX glue gather); ship to the kernel as bf16 MXU operand.
    embedded = emb_table[tokens].astype(jnp.bfloat16)         # (seq, batch, E)

    # Pad batch to the sublane multiple so MXU rows / vreg sublanes are filled.
    BT = 8
    b_pad = ((batch + BT - 1) // BT) * BT
    if b_pad != batch:
        embedded = jnp.pad(embedded, ((0, 0), (0, b_pad - batch), (0, 0)))
    nbt = b_pad // BT

    # bf16 weight operands, f32 accumulation; bias fused once outside the recurrence.
    wih_t = w_ih.T.astype(jnp.bfloat16)                      # (E, 4H)
    whh_t = w_hh.T.astype(jnp.bfloat16)                      # (H, 4H)
    bias = (b_ih + b_hh).reshape(1, 4 * H).astype(jnp.float32)

    # NOTE: weights use constant index_maps (loaded once).  If H scales toward the real
    # IMDB vocab, W_hh must instead be K/N-tiled over a reduction grid axis
    # (v7x only has 64 MiB VMEM).
    out = pl.pallas_call(
        lstm_logsoftmax_kernel,
        out_shape=jax.ShapeDtypeStruct((seq, b_pad, H), jnp.float32),
        grid_spec=pltpu.PrefetchScalarGridSpec(
            num_scalar_prefetch=0,
            grid=(nbt,),                                      # independent batch tiles
            in_specs=[
                pl.BlockSpec((seq, BT, E), lambda i: (0, i, 0)),
                pl.BlockSpec((E, 4 * H), lambda i: (0, 0)),
                pl.BlockSpec((H, 4 * H), lambda i: (0, 0)),
                pl.BlockSpec((1, 4 * H), lambda i: (0, 0)),
            ],
            out_specs=pl.BlockSpec((seq, BT, H), lambda i: (0, i, 0)),
            scratch_shapes=[pltpu.VMEM((seq * BT, 4 * H), jnp.float32)],
        ),
        compiler_params=pltpu.CompilerParams(
            dimension_semantics=("parallel",)),               # shard tiles across TCs (v7x)
    )(embedded, wih_t, whh_t, bias)                           # (seq, b_pad, H)

    out = out[:, :batch, :]                                   # drop batch padding

    # Reproduce the PyTorch forward exactly:
    #   output = output.view(-1, H); output1 = log_softmax(output, dim=1)  [in kernel]
    #   if BATCH_SIZE == dim[1]: output1 = output1.view(-1, OUTPUT_DIM, BATCH_SIZE)
    #   else:                    output1 = output1.view(dim[1], OUTPUT_DIM, -1)
    # TODO(synk): this is a raw reshape (faithful to the buggy .view()), not a transpose.
    flat = out.reshape(-1, H)
    if batch_size == batch:
        out1 = flat.reshape(-1, H, batch_size)
    else:
        out1 = flat.reshape(batch, H, -1)
    return out1


if __name__ == "__main__":
    BATCH_SIZE = 2
    SEQ = 8            # (fix_length=50 in the original; small here)
    VOCAB = 128        # input_dim == OUTPUT_DIM == len(TEXT.vocab)
    EMB = 32
    H = VOCAB          # nn.LSTM(embedding_dim, output_dim) -> hidden size == OUTPUT_DIM

    key = jax.random.PRNGKey(0)
    k1, k2, k3, k4, k5, k6 = jax.random.split(key, 6)
    bound = float(1.0 / (H ** 0.5))

    emb_table = jax.random.normal(k1, (VOCAB, EMB), jnp.float32)             # nn.Embedding weight
    w_ih = jax.random.uniform(k2, (4 * H, EMB), jnp.float32, -bound, bound)  # LSTM weight_ih_l0
    w_hh = jax.random.uniform(k3, (4 * H, H), jnp.float32, -bound, bound)    # LSTM weight_hh_l0
    b_ih = jax.random.uniform(k4, (4 * H,), jnp.float32, -bound, bound)      # LSTM bias_ih_l0
    b_hh = jax.random.uniform(k5, (4 * H,), jnp.float32, -bound, bound)      # LSTM bias_hh_l0

    tokens = jax.random.randint(k6, (SEQ, BATCH_SIZE), 0, VOCAB, jnp.int32)  # x: (seq, batch)

    out = rnn_forward(tokens, emb_table, w_ih, w_hh, b_ih, b_hh, BATCH_SIZE)
    jax.block_until_ready(out)
    assert out.shape == (SEQ, VOCAB, BATCH_SIZE), out.shape
    print("KERNEL_OK")
</pallas_src>

<mosaic_0001>
module attributes {stable_mosaic.version = 11 : i64} {
  func.func @lstm_logsoftmax_kernel(%arg0: i32, %arg1: memref<8x8x32xbf16, #tpu.memory_space<vmem>>, %arg2: memref<32x512xbf16, #tpu.memory_space<vmem>>, %arg3: memref<128x512xbf16, #tpu.memory_space<vmem>>, %arg4: memref<1x512xf32, #tpu.memory_space<vmem>>, %arg5: memref<8x8x128xf32, #tpu.memory_space<vmem>>, %arg6: memref<64x512xf32, #tpu.memory_space<vmem>>) attributes {dimension_semantics = [#tpu.dimension_semantics<parallel>], iteration_bounds = array<i64: 1>, scalar_prefetch = 0 : i64, scratch_operands = 1 : i64, tpu.core_type = #tpu.core_type<tc>, window_params = [{transform_indices = @transform_0, window_bounds = array<i64: 8, 8, 32>}, {pipeline_mode = #tpu.pipeline_mode<synchronous>, transform_indices = @transform_1, window_bounds = array<i64: 32, 512>}, {pipeline_mode = #tpu.pipeline_mode<synchronous>, transform_indices = @transform_2, window_bounds = array<i64: 128, 512>}, {pipeline_mode = #tpu.pipeline_mode<synchronous>, transform_indices = @transform_3, window_bounds = array<i64: 1, 512>}, {transform_indices = @transform_4, window_bounds = array<i64: 8, 8, 128>}]} {
    %c0 = arith.constant 0 : index
    %c0_0 = arith.constant 0 : index
    %c0_1 = arith.constant 0 : index
    %0 = vector.load %arg1[%c0, %c0_0, %c0_1] : memref<8x8x32xbf16, #tpu.memory_space<vmem>>, vector<8x8x32xbf16>
    %1 = vector.shape_cast %0 : vector<8x8x32xbf16> to vector<64x32xbf16>
    %c0_2 = arith.constant 0 : index
    %c0_3 = arith.constant 0 : index
    %2 = vector.load %arg2[%c0_2, %c0_3] : memref<32x512xbf16, #tpu.memory_space<vmem>>, vector<32x512xbf16>
    %cst = arith.constant dense<0.000000e+00> : vector<64x512xf32>
    %3 = tpu.matmul %1, %2, %cst {dimension_numbers = #tpu.dot_dimension_numbers<[1], [0], [0], [1], [0, 0, 1, 1], [], []>} : vector<64x32xbf16>, vector<32x512xbf16>, vector<64x512xf32> -> vector<64x512xf32>
    %c0_4 = arith.constant 0 : index
    %c0_5 = arith.constant 0 : index
    %4 = vector.load %arg4[%c0_4, %c0_5] : memref<1x512xf32, #tpu.memory_space<vmem>>, vector<1x512xf32>
    %5 = vector.broadcast %4 : vector<1x512xf32> to vector<64x512xf32>
    %6 = arith.addf %3, %5 : vector<64x512xf32>
    %c0_6 = arith.constant 0 : index
    %c0_7 = arith.constant 0 : index
    %7 = vector.load %arg6[%c0_6, %c0_7] : memref<64x512xf32, #tpu.memory_space<vmem>>, vector<64x512xf32>
    tpu.vector_store %arg6[%c0_6, %c0_7], %6 {strides = array<i32>} : memref<64x512xf32, #tpu.memory_space<vmem>>, vector<64x512xf32>,
    %cst_8 = arith.constant 0.000000e+00 : f32
    %8 = vector.broadcast %cst_8 : f32 to vector<8x128xf32>
    %cst_9 = arith.constant 0.000000e+00 : f32
    %9 = vector.broadcast %cst_9 : f32 to vector<8x128xf32>
    %c0_i32 = arith.constant 0 : i32
    %c8_i32 = arith.constant 8 : i32
    %10 = arith.addi %c0_i32, %c8_i32 : i32
    %c1_i32 = arith.constant 1 : i32
    %11:2 = scf.for %arg7 = %c0_i32 to %10 step %c1_i32 iter_args(%arg8 = %8, %arg9 = %9) -> (vector<8x128xf32>, vector<8x128xf32>)  : i32 {
      %c8_i32_11 = arith.constant 8 : i32
      %12 = arith.muli %arg7, %c8_i32_11 : i32
      %13 = tpu.assume_multiple %12, 8 : i32
      %14 = arith.index_cast %13 : i32 to index
      %c0_12 = arith.constant 0 : index
      %15 = vector.load %arg6[%14, %c0_12] : memref<64x512xf32, #tpu.memory_space<vmem>>, vector<8x512xf32>
      %16 = arith.truncf %arg8 : vector<8x128xf32> to vector<8x128xbf16>
      %c0_13 = arith.constant 0 : index
      %c0_14 = arith.constant 0 : index
      %17 = vector.load %arg3[%c0_13, %c0_14] : memref<128x512xbf16, #tpu.memory_space<vmem>>, vector<128x512xbf16>
      %cst_15 = arith.constant dense<0.000000e+00> : vector<8x512xf32>
      %18 = tpu.matmul %16, %17, %cst_15 {dimension_numbers = #tpu.dot_dimension_numbers<[1], [0], [0], [1], [0, 0, 1, 1], [], []>} : vector<8x128xbf16>, vector<128x512xbf16>, vector<8x512xf32> -> vector<8x512xf32>
      %19 = arith.addf %15, %18 : vector<8x512xf32>
      %20 = vector.extract_strided_slice %19 {offsets = [0, 0], sizes = [8, 128], strides = [1, 1]} : vector<8x512xf32> to vector<8x128xf32>
      %cst_16 = arith.constant 0.000000e+00 : f32
      %21 = vector.broadcast %cst_16 : f32 to vector<8x128xf32>
      %22 = arith.subf %21, %20 : vector<8x128xf32>
      %23 = math.exp %22 : vector<8x128xf32>
      %cst_17 = arith.constant 1.000000e+00 : f32
      %24 = vector.broadcast %cst_17 : f32 to vector<8x128xf32>
      %25 = arith.addf %24, %23 : vector<8x128xf32>
      %26 = tpu.reciprocal %25 {approx = true} : vector<8x128xf32> -> vector<8x128xf32>
      %27 = vector.extract_strided_slice %19 {offsets = [0, 128], sizes = [8, 128], strides = [1, 1]} : vector<8x512xf32> to vector<8x128xf32>
      %cst_18 = arith.constant 0.000000e+00 : f32
      %28 = vector.broadcast %cst_18 : f32 to vector<8x128xf32>
      %29 = arith.subf %28, %27 : vector<8x128xf32>
      %30 = math.exp %29 : vector<8x128xf32>
      %cst_19 = arith.constant 1.000000e+00 : f32
      %31 = vector.broadcast %cst_19 : f32 to vector<8x128xf32>
      %32 = arith.addf %31, %30 : vector<8x128xf32>
      %33 = tpu.reciprocal %32 {approx = true} : vector<8x128xf32> -> vector<8x128xf32>
      %34 = vector.extract_strided_slice %19 {offsets = [0, 256], sizes = [8, 128], strides = [1, 1]} : vector<8x512xf32> to vector<8x128xf32>
      %35 = math.tanh %34 : vector<8x128xf32>
      %36 = vector.extract_strided_slice %19 {offsets = [0, 384], sizes = [8, 128], strides = [1, 1]} : vector<8x512xf32> to vector<8x128xf32>
      %cst_20 = arith.constant 0.000000e+00 : f32
      %37 = vector.broadcast %cst_20 : f32 to vector<8x128xf32>
      %38 = arith.subf %37, %36 : vector<8x128xf32>
      %39 = math.exp %38 : vector<8x128xf32>
      %cst_21 = arith.constant 1.000000e+00 : f32
      %40 = vector.broadcast %cst_21 : f32 to vector<8x128xf32>
      %41 = arith.addf %40, %39 : vector<8x128xf32>
      %42 = tpu.reciprocal %41 {approx = true} : vector<8x128xf32> -> vector<8x128xf32>
      %43 = arith.mulf %33, %arg9 : vector<8x128xf32>
      %44 = arith.mulf %26, %35 : vector<8x128xf32>
      %45 = arith.addf %43, %44 : vector<8x128xf32>
      %46 = math.tanh %45 : vector<8x128xf32>
      %47 = arith.mulf %42, %46 : vector<8x128xf32>
      %cst_22 = arith.constant dense<0xFF800000> : vector<8xf32>
      %48 = vector.multi_reduction <maximumf>, %47, %cst_22 [1] : vector<8x128xf32> to vector<8xf32>
      %49 = vector.shape_cast %48 : vector<8xf32> to vector<8x1xf32>
      %50 = vector.broadcast %49 : vector<8x1xf32> to vector<8x128xf32>
      %51 = arith.subf %47, %50 : vector<8x128xf32>
      %52 = math.exp %51 : vector<8x128xf32>
      %cst_23 = arith.constant dense<0.000000e+00> : vector<8xf32>
      %53 = vector.multi_reduction <add>, %52, %cst_23 [1] : vector<8x128xf32> to vector<8xf32>
      %54 = vector.shape_cast %53 : vector<8xf32> to vector<8x1xf32>
      %55 = math.log %54 : vector<8x1xf32>
      %56 = vector.broadcast %55 : vector<8x1xf32> to vector<8x128xf32>
      %57 = arith.subf %51, %56 : vector<8x128xf32>
      %58 = arith.index_cast %arg7 : i32 to index
      %c0_24 = arith.constant 0 : index
      %c0_25 = arith.constant 0 : index
      %59 = vector.load %arg5[%58, %c0_24, %c0_25] : memref<8x8x128xf32, #tpu.memory_space<vmem>>, vector<1x8x128xf32>
      %60 = vector.shape_cast %59 : vector<1x8x128xf32> to vector<8x128xf32>
      %61 = vector.shape_cast %57 : vector<8x128xf32> to vector<1x8x128xf32>
      tpu.vector_store %arg5[%58, %c0_24, %c0_25], %61 {strides = array<i32>} : memref<8x8x128xf32, #tpu.memory_space<vmem>>, vector<1x8x128xf32>,
      scf.yield %47, %45 : vector<8x128xf32>, vector<8x128xf32>
    }
    %c8_i32_10 = arith.constant 8 : i32
    return
  }
  func.func @transform_0(%arg0: i32) -> (i32, i32, i32) {
    %c0_i32 = arith.constant 0 : i32
    %c0_i32_0 = arith.constant 0 : i32
    %c0_i32_1 = arith.constant 0 : i32
    return %c0_i32, %arg0, %c0_i32_0 : i32, i32, i32
  }
  func.func @transform_1(%arg0: i32) -> (i32, i32) {
    %c0_i32 = arith.constant 0 : i32
    %c0_i32_0 = arith.constant 0 : i32
    %c0_i32_1 = arith.constant 0 : i32
    return %c0_i32, %c0_i32_0 : i32, i32
  }
  func.func @transform_2(%arg0: i32) -> (i32, i32) {
    %c0_i32 = arith.constant 0 : i32
    %c0_i32_0 = arith.constant 0 : i32
    %c0_i32_1 = arith.constant 0 : i32
    return %c0_i32, %c0_i32_0 : i32, i32
  }
  func.func @transform_3(%arg0: i32) -> (i32, i32) {
    %c0_i32 = arith.constant 0 : i32
    %c0_i32_0 = arith.constant 0 : i32
    %c0_i32_1 = arith.constant 0 : i32
    return %c0_i32, %c0_i32_0 : i32, i32
  }
  func.func @transform_4(%arg0: i32) -> (i32, i32, i32) {
    %c0_i32 = arith.constant 0 : i32
    %c0_i32_0 = arith.constant 0 : i32
    %c0_i32_1 = arith.constant 0 : i32
    return %c0_i32, %arg0, %c0_i32_0 : i32, i32, i32
  }
}

</mosaic_0001>

<llo_original>
// kernel: tpu_custom_call.1
$region0: #{tpu_custom_call.1}
  #allocation0 [shape = 'u32[]', space=smem, size = 0x4, offset = 0x4, fixed_abs, tag = 'smem constant byte address 0x4 - core index']
  #allocation1 [shape = 'u32[144,128]{1,0:T(1,128)}', space=vmem, size = 0x12000, scoped, tag = 'internal scratch']
  #allocation2 [shape = 'f32[64,512]{1,0:T(8,128)}', space=vmem, size = 0x20000, scoped, tag = 'scratch operand']
  %s0 = inlined_call_operand.hbm [shape: bf16[8,8,32], index: 0, kind: input, shape index: {}]
  %s1 = inlined_call_operand.hbm [shape: bf16[32,512], index: 1, kind: input, shape index: {}]
  %s2 = inlined_call_operand.hbm [shape: bf16[128,512], index: 2, kind: input, shape index: {}]
  %s3 = inlined_call_operand.vmem [shape: f32[1,512], index: 3, kind: input, shape index: {}]
  %s4 = inlined_call_operand.hbm [shape: f32[8,8,128], index: 4, kind: output, shape index: {}]
  %s5 = sld [smem:[#allocation0]]
  $region45: #{tpu_custom_call.1} parent=0
    _
  %s7 = ssub.s32 1, %s5
  %s8 = scalar_select 0, %s7, %s5
  $region1: #{tpu_custom_call.1} parent=0
    #allocation3 [shape = 'u8[16384]{0}', space=vmem, size = 0x4000, scoped, tag = 'input window, operand 0, single buffered']
    #allocation4 [shape = 's32[1]{0}', space=sflag, size = 0x4, scoped, tag = 'scoped memory for tpu_custom_call.1']
    #allocation5 [shape = 's32[1]{0}', space=sflag, size = 0x4, scoped, tag = 'scoped memory for tpu_custom_call.1']
    #allocation6 [shape = 'u8[32768]{0}', space=vmem, size = 0x8000, scoped, tag = 'input window, operand 1, single buffered']
    #allocation7 [shape = 's32[1]{0}', space=sflag, size = 0x4, scoped, tag = 'scoped memory for tpu_custom_call.1']
    #allocation8 [shape = 'u8[131072]{0}', space=vmem, size = 0x20000, scoped, tag = 'input window, operand 2, single buffered']
    #allocation9 [shape = 'u8[32768]{0}', space=vmem, size = 0x8000, scoped, tag = 'output window, operand 0, single buffered']
    %9 = vsyncpa [#allocation4], 0
    %10 = vsyncpa [#allocation7], 0
    %11 = vsyncpa [#allocation5], 0
    // Predicated region
    $region2: #{tpu_custom_call.1} parent=1 // pred_check
      _
    $region3: #{tpu_custom_call.1} parent=1 // pred_check_branch
      %13 = sbr.rel (0) target = $region5
    $region4: #{tpu_custom_call.1} parent=1 // pred_region
      %s15 = ssub.s32 512, 512
      %16 = vsyncadd [#allocation4], %s15
      %s17 = sshll.u32 [#allocation3], 4
      %s18 = int_to_ptr.vmem [resolvable:$true] %s17
      %23 = dma.hbm_to_vmem [thread:$0]  %s0, 512, %s18, [#allocation4], 64, 64, 4
    $region5: #{tpu_custom_call.1} parent=1 // pred_fallthru
      _
    // Predicated region
    $region6: #{tpu_custom_call.1} parent=1 // pred_check
      _
    $region7: #{tpu_custom_call.1} parent=1 // pred_check_branch
      %25 = sbr.rel (0) target = $region9
    $region8: #{tpu_custom_call.1} parent=1 // pred_region
      %s27 = ssub.s32 1024, 1024
      %28 = vsyncadd [#allocation7], %s27
      %s29 = sshll.u32 [#allocation6], 4
      %s30 = int_to_ptr.vmem [resolvable:$true] %s29
      %35 = dma.hbm_to_vmem [thread:$0]  %s1, 1024, %s30, [#allocation7], 256, 256, 16
    $region9: #{tpu_custom_call.1} parent=1 // pred_fallthru
      _
    // Predicated region
    $region10: #{tpu_custom_call.1} parent=1 // pred_check
      _
    $region11: #{tpu_custom_call.1} parent=1 // pred_check_branch
      %37 = sbr.rel (0) target = $region13
    $region12: #{tpu_custom_call.1} parent=1 // pred_region
      %s39 = ssub.s32 4096, 4096
      %40 = vsyncadd [#allocation7], %s39
      %s41 = sshll.u32 [#allocation8], 4
      %s42 = int_to_ptr.vmem [resolvable:$true] %s41
      %47 = dma.hbm_to_vmem [thread:$0]  %s2, 4096, %s42, [#allocation7], 256, 256, 16
    $region13: #{tpu_custom_call.1} parent=1 // pred_fallthru
      _
    // Predicated region
    $region14: #{tpu_custom_call.1} parent=1 // pred_check
      _
    $region15: #{tpu_custom_call.1} parent=1 // pred_check_branch
      %49 = sbr.rel (0) target = $region17
    $region16: #{tpu_custom_call.1} parent=1 // pred_region
      _
    $region17: #{tpu_custom_call.1} parent=1 // pred_fallthru
      _
    // Predicated region
    $region18: #{tpu_custom_call.1} parent=1 // pred_check
      _
    $region19: #{tpu_custom_call.1} parent=1 // pred_check_branch
      %51 = sbr.rel (0) target = $region21
    $region20: #{tpu_custom_call.1} parent=1 // pred_region
      %52 = dma.done [#allocation4], 512
    $region21: #{tpu_custom_call.1} parent=1 // pred_fallthru
      _
    // Predicated region
    $region22: #{tpu_custom_call.1} parent=1 // pred_check
      _
    $region23: #{tpu_custom_call.1} parent=1 // pred_check_branch
      %54 = sbr.rel (0) target = $region25
    $region24: #{tpu_custom_call.1} parent=1 // pred_region
      %55 = dma.done [#allocation7], 1024
    $region25: #{tpu_custom_call.1} parent=1 // pred_fallthru
      _
    // Predicated region
    $region26: #{tpu_custom_call.1} parent=1 // pred_check
      _
    $region27: #{tpu_custom_call.1} parent=1 // pred_check_branch
      %57 = sbr.rel (0) target = $region29
    $region28: #{tpu_custom_call.1} parent=1 // pred_region
      %58 = dma.done [#allocation7], 4096
    $region29: #{tpu_custom_call.1} parent=1 // pred_fallthru
      _
    %v60 = vld [vmem:[#allocation3] sm:$0xf]
    %v61 = vld [vmem:[#allocation3 + $0x4] sm:$0xf]
    %v62 = vld [vmem:[#allocation3 + $0x8] sm:$0xf]
    %v63 = vld [vmem:[#allocation3 + $0xc] sm:$0xf]
    %v64 = vld [vmem:[#allocation3 + $0x10] sm:$0xf]
    %v65 = vld [vmem:[#allocation3 + $0x14] sm:$0xf]
    %v66 = vld [vmem:[#allocation3 + $0x18] sm:$0xf]
    %v67 = vld [vmem:[#allocation3 + $0x1c] sm:$0xf]
    %v68 = vld [vmem:[#allocation6] sm:$0xff]
    %v69 = vld [vmem:[#allocation6 + $0x8] sm:$0xff]
    %v70 = vld [vmem:[#allocation6 + $0x10] sm:$0xff]
    %v71 = vld [vmem:[#allocation6 + $0x18] sm:$0xff]
    %v72 = vld [vmem:[#allocation6 + $0x20] sm:$0xff]
    %v73 = vld [vmem:[#allocation6 + $0x28] sm:$0xff]
    %v74 = vld [vmem:[#allocation6 + $0x30] sm:$0xff]
    %v75 = vld [vmem:[#allocation6 + $0x38] sm:$0xff]
    %v76 = vld [vmem:[%s3] sm:$0xf]
    %v78 = vlaneseq
    %v79 = vshrl.u32 %v78, 7
    %v80 = vsub.s32 0, %v79
    %v81 = vrot.slane %v76, %v80
    %v82 = vlaneseq
    %v83 = vshrl.u32 %v82, 7
    %v84 = vsub.s32 1, %v83
    %v85 = vrot.slane %v76, %v84
    %v86 = vlaneseq
    %v87 = vshrl.u32 %v86, 7
    %v88 = vsub.s32 2, %v87
    %v89 = vrot.slane %v76, %v88
    %v90 = vlaneseq
    %v91 = vshrl.u32 %v90, 7
    %v92 = vsub.s32 3, %v91
    %v93 = vrot.slane %v76, %v92
    %v106 = vunpack.c.l.b16 %v60
    %v107 = vunpack.c.l.b16 %v61
    %v108 = vunpack.c.l.b16 %v62
    %v109 = vunpack.c.l.b16 %v63
    %v110 = vunpack.c.l.b16 %v64
    %v111 = vunpack.c.l.b16 %v65
    %v112 = vunpack.c.l.b16 %v66
    %v113 = vunpack.c.l.b16 %v67
    %v114 = vpack.c.b16 %v107, %v106
    %v115 = vpack.c.b16 %v109, %v108
    %v116 = vpack.c.b16 %v111, %v110
    %v117 = vpack.c.b16 %v113, %v112
    %v126 = vunpack.c.l.b16 %v68
    %v127 = vunpack.c.h.b16 %v68
    %v128 = vunpack.c.l.b16 %v69
    %v129 = vunpack.c.h.b16 %v69
    %v130 = vunpack.c.l.b16 %v70
    %v131 = vunpack.c.h.b16 %v70
    %v132 = vunpack.c.l.b16 %v71
    %v133 = vunpack.c.h.b16 %v71
    %v134 = vunpack.c.l.b16 %v72
    %v135 = vunpack.c.h.b16 %v72
    %v136 = vunpack.c.l.b16 %v73
    %v137 = vunpack.c.h.b16 %v73
    %v138 = vunpack.c.l.b16 %v74
    %v139 = vunpack.c.h.b16 %v74
    %v140 = vunpack.c.l.b16 %v75
    %v141 = vunpack.c.h.b16 %v75
    %v142 = vpack.c.b16 %v130, %v126
    %v143 = vpack.c.b16 %v131, %v127
    %v144 = vpack.c.b16 %v132, %v128
    %v145 = vpack.c.b16 %v133, %v129
    %v146 = vpack.c.b16 %v138, %v134
    %v147 = vpack.c.b16 %v139, %v135
    %v148 = vpack.c.b16 %v140, %v136
    %v149 = vpack.c.b16 %v141, %v137
    %vm158 = vcmask 261120
    %v160 = vsel %vm158, %v114, 0
    %v163 = vsel %vm158, %v115, 0
    %v166 = vsel %vm158, %v116, 0
    %v169 = vsel %vm158, %v117, 0
    %171 = vmatprep.subr.bf16.mxu0 %v143
    %172 = vmatpush1.bf16.msra.mxu0 %v142
    %173 = vmatprep.subr.bf16.mxu0 %v147
    %174 = vmatpush1.bf16.msra.mxu0 %v146
    %175 = vmatprep.subr.bf16.mxu0 0
    %176 = vmatpush1.bf16.msra.mxu0 0
    %177 = vmatprep.subr.bf16.mxu0 0
    %178 = vmatpush1.bf16.msra.mxu0 0
    %179 = vmatprep.subr.bf16.mxu0 0
    %180 = vmatpush1.bf16.msra.mxu0 0
    %181 = vmatprep.subr.bf16.mxu0 0
    %182 = vmatpush1.bf16.msra.mxu0 0
    %183 = vmatprep.subr.bf16.mxu0 0
    %184 = vmatpush1.bf16.msra.mxu0 0
    %185 = vmatprep.subr.bf16.mxu0 0
    %186 = vmatpush1.bf16.msra.mxu0 0
    %187 = vmatprep.subr.bf16.mxu0 0
    %188 = vmatpush1.bf16.msra.mxu0 0
    %189 = vmatprep.subr.bf16.mxu0 0
    %190 = vmatpush1.bf16.msra.mxu0 0
    %191 = vmatprep.subr.bf16.mxu0 0
    %192 = vmatpush1.bf16.msra.mxu0 0
    %193 = vmatprep.subr.bf16.mxu0 0
    %194 = vmatpush1.bf16.msra.mxu0 0
    %195 = vmatprep.subr.bf16.mxu0 0
    %196 = vmatpush1.bf16.msra.mxu0 0
    %197 = vmatprep.subr.bf16.mxu0 0
    %198 = vmatpush1.bf16.msra.mxu0 0
    %199 = vmatprep.subr.bf16.mxu0 0
    %200 = vmatpush1.bf16.msra.mxu0 0
    %201 = vmatprep.subr.bf16.mxu0 0
    %202 = vmatpush1.bf16.msra.mxu0 0
    %203 = vmatprep.mubr.bf16.mxu0 0
    %204 = vmatmul.mubr.bf16.gmra.mrb[0].mxu0 %v160
    %v205 = vpop.f32.mrb[0].mxu0
    %v206 = vadd.f32 %v81, %v205
    %v207 = vpop.f32.mrb[0].mxu0
    %v208 = vadd.f32 %v85, %v207
    %v209 = vpop.f32.mrb[0].mxu0
    %v210 = vadd.f32 %v81, %v209
    %v211 = vpop.f32.mrb[0].mxu0
    %v212 = vadd.f32 %v85, %v211
    %213 = vmatprep.mubr.bf16.mxu0 0
    %214 = vmatmul.mubr.bf16.gmra.mrb[0].mxu0 %v163
    %v215 = vpop.f32.mrb[0].mxu0
    %v216 = vadd.f32 %v81, %v215
    %v217 = vpop.f32.mrb[0].mxu0
    %v218 = vadd.f32 %v85, %v217
    %v219 = vpop.f32.mrb[0].mxu0
    %v220 = vadd.f32 %v81, %v219
    %v221 = vpop.f32.mrb[0].mxu0
    %v222 = vadd.f32 %v85, %v221
    %223 = vmatprep.mubr.bf16.mxu0 0
    %224 = vmatmul.mubr.bf16.gmra.mrb[0].mxu0 %v166
    %v225 = vpop.f32.mrb[0].mxu0
    %v226 = vadd.f32 %v81, %v225
    %v227 = vpop.f32.mrb[0].mxu0
    %v228 = vadd.f32 %v85, %v227
    %v229 = vpop.f32.mrb[0].mxu0
    %v230 = vadd.f32 %v81, %v229
    %v231 = vpop.f32.mrb[0].mxu0
    %v232 = vadd.f32 %v85, %v231
    %233 = vmatprep.mubr.bf16.mxu0 0
    %234 = vmatmul.mubr.bf16.gmra.mrb[0].mxu0 %v169
    %v235 = vpop.f32.mrb[0].mxu0
    %v236 = vadd.f32 %v81, %v235
    %v237 = vpop.f32.mrb[0].mxu0
    %v238 = vadd.f32 %v85, %v237
    %v239 = vpop.f32.mrb[0].mxu0
    %v240 = vadd.f32 %v81, %v239
    %v241 = vpop.f32.mrb[0].mxu0
    %v242 = vadd.f32 %v85, %v241
    %243 = vdwg.mxu0
    %244 = vmatprep.subr.bf16.mxu0 %v145
    %245 = vmatpush1.bf16.msra.mxu0 %v144
    %246 = vmatprep.subr.bf16.mxu0 %v149
    %247 = vmatpush1.bf16.msra.mxu0 %v148
    %248 = vmatprep.subr.bf16.mxu0 0
    %249 = vmatpush1.bf16.msra.mxu0 0
    %250 = vmatprep.subr.bf16.mxu0 0
    %251 = vmatpush1.bf16.msra.mxu0 0
    %252 = vmatprep.subr.bf16.mxu0 0
    %253 = vmatpush1.bf16.msra.mxu0 0
    %254 = vmatprep.subr.bf16.mxu0 0
    %255 = vmatpush1.bf16.msra.mxu0 0
    %256 = vmatprep.subr.bf16.mxu0 0
    %257 = vmatpush1.bf16.msra.mxu0 0
    %258 = vmatprep.subr.bf16.mxu0 0
    %259 = vmatpush1.bf16.msra.mxu0 0
    %260 = vmatprep.subr.bf16.mxu0 0
    %261 = vmatpush1.bf16.msra.mxu0 0
    %262 = vmatprep.subr.bf16.mxu0 0
    %263 = vmatpush1.bf16.msra.mxu0 0
    %264 = vmatprep.subr.bf16.mxu0 0
    %265 = vmatpush1.bf16.msra.mxu0 0
    %266 = vmatprep.subr.bf16.mxu0 0
    %267 = vmatpush1.bf16.msra.mxu0 0
    %268 = vmatprep.subr.bf16.mxu0 0
    %269 = vmatpush1.bf16.msra.mxu0 0
    %270 = vmatprep.subr.bf16.mxu0 0
    %271 = vmatpush1.bf16.msra.mxu0 0
    %272 = vmatprep.subr.bf16.mxu0 0
    %273 = vmatpush1.bf16.msra.mxu0 0
    %274 = vmatprep.subr.bf16.mxu0 0
    %275 = vmatpush1.bf16.msra.mxu0 0
    %276 = vmatprep.mubr.bf16.mxu0 0
    %277 = vmatmul.mubr.bf16.gmra.mrb[0].mxu0 %v160
    %v278 = vpop.f32.mrb[0].mxu0
    %v279 = vadd.f32 %v89, %v278
    %v280 = vpop.f32.mrb[0].mxu0
    %v281 = vadd.f32 %v93, %v280
    %v282 = vpop.f32.mrb[0].mxu0
    %v283 = vadd.f32 %v89, %v282
    %v284 = vpop.f32.mrb[0].mxu0
    %v285 = vadd.f32 %v93, %v284
    %286 = vmatprep.mubr.bf16.mxu0 0
    %287 = vmatmul.mubr.bf16.gmra.mrb[0].mxu0 %v163
    %v288 = vpop.f32.mrb[0].mxu0
    %v289 = vadd.f32 %v89, %v288
    %v290 = vpop.f32.mrb[0].mxu0
    %v291 = vadd.f32 %v93, %v290
    %v292 = vpop.f32.mrb[0].mxu0
    %v293 = vadd.f32 %v89, %v292
    %v294 = vpop.f32.mrb[0].mxu0
    %v295 = vadd.f32 %v93, %v294
    %296 = vmatprep.mubr.bf16.mxu0 0
    %297 = vmatmul.mubr.bf16.gmra.mrb[0].mxu0 %v166
    %v298 = vpop.f32.mrb[0].mxu0
    %v299 = vadd.f32 %v89, %v298
    %v300 = vpop.f32.mrb[0].mxu0
    %v301 = vadd.f32 %v93, %v300
    %v302 = vpop.f32.mrb[0].mxu0
    %v303 = vadd.f32 %v89, %v302
    %v304 = vpop.f32.mrb[0].mxu0
    %v305 = vadd.f32 %v93, %v304
    %306 = vmatprep.mubr.bf16.mxu0 0
    %307 = vmatmul.mubr.bf16.gmra.mrb[0].mxu0 %v169
    %v308 = vpop.f32.mrb[0].mxu0
    %v309 = vadd.f32 %v89, %v308
    %v310 = vpop.f32.mrb[0].mxu0
    %v311 = vadd.f32 %v93, %v310
    %v312 = vpop.f32.mrb[0].mxu0
    %v313 = vadd.f32 %v89, %v312
    %v314 = vpop.f32.mrb[0].mxu0
    %v315 = vadd.f32 %v93, %v314
    %316 = vdwg.mxu0
    %317 = vst [vmem:[#allocation2] sm:$0xff] %v206
    %318 = vst [vmem:[#allocation2 + $0x8] sm:$0xff] %v208
    %319 = vst [vmem:[#allocation2 + $0x10] sm:$0xff] %v279
    %320 = vst [vmem:[#allocation2 + $0x18] sm:$0xff] %v281
    %321 = vst [vmem:[#allocation2 + $0x20] sm:$0xff] %v210
    %322 = vst [vmem:[#allocation2 + $0x28] sm:$0xff] %v212
    %323 = vst [vmem:[#allocation2 + $0x30] sm:$0xff] %v283
    %324 = vst [vmem:[#allocation2 + $0x38] sm:$0xff] %v285
    %325 = vst [vmem:[#allocation2 + $0x40] sm:$0xff] %v216
    %326 = vst [vmem:[#allocation2 + $0x48] sm:$0xff] %v218
    %327 = vst [vmem:[#allocation2 + $0x50] sm:$0xff] %v289
    %328 = vst [vmem:[#allocation2 + $0x58] sm:$0xff] %v291
    %329 = vst [vmem:[#allocation2 + $0x60] sm:$0xff] %v220
    %330 = vst [vmem:[#allocation2 + $0x68] sm:$0xff] %v222
    %331 = vst [vmem:[#allocation2 + $0x70] sm:$0xff] %v293
    %332 = vst [vmem:[#allocation2 + $0x78] sm:$0xff] %v295
    %333 = vst [vmem:[#allocation2 + $0x80] sm:$0xff] %v226
    %334 = vst [vmem:[#allocation2 + $0x88] sm:$0xff] %v228
    %335 = vst [vmem:[#allocation2 + $0x90] sm:$0xff] %v299
    %336 = vst [vmem:[#allocation2 + $0x98] sm:$0xff] %v301
    %337 = vst [vmem:[#allocation2 + $0xa0] sm:$0xff] %v230
    %338 = vst [vmem:[#allocation2 + $0xa8] sm:$0xff] %v232
    %339 = vst [vmem:[#allocation2 + $0xb0] sm:$0xff] %v303
    %340 = vst [vmem:[#allocation2 + $0xb8] sm:$0xff] %v305
    %341 = vst [vmem:[#allocation2 + $0xc0] sm:$0xff] %v236
    %342 = vst [vmem:[#allocation2 + $0xc8] sm:$0xff] %v238
    %343 = vst [vmem:[#allocation2 + $0xd0] sm:$0xff] %v309
    %344 = vst [vmem:[#allocation2 + $0xd8] sm:$0xff] %v311
    %345 = vst [vmem:[#allocation2 + $0xe0] sm:$0xff] %v240
    %346 = vst [vmem:[#allocation2 + $0xe8] sm:$0xff] %v242
    %347 = vst [vmem:[#allocation2 + $0xf0] sm:$0xff] %v313
    %348 = vst [vmem:[#allocation2 + $0xf8] sm:$0xff] %v315
    loop: start=0, step=1, limit=8
    $region30: #{tpu_custom_call.1} parent=1 // loop_pre_header
      _
    $region31: #{tpu_custom_call.1} parent=1 // loop_header
      %s350 = sphi 0, %s354
      %p351 = scmp.ge.s32.totalorder %s350, 8
      %v355 = vphi 0.0, %v666
      %v356 = vphi 0.0, %v664
    $region32: #{tpu_custom_call.1} parent=1 // loop_header_branch
      %353 = sbr.rel (%p351) target = $region36
    $region33: #{tpu_custom_call.1} parent=1 // loop_body
      %s357 = smul.u32 %s350, 8
      %s358 = sshra.s32 %s357, 3
      %s359 = sand.u32 %s357, 7
      %s360 = smul.u32 %s358, 4
      %s361 = smul.addr %s360, 8
      %s362 = scalar_lea.vmem [#allocation2], %s361
      %v363 = vld [vmem:[%s362] sm:$0xff]
      %v364 = vld [vmem:[%s362 + $0x8] sm:$0xff]
      %v365 = vld [vmem:[%s362 + $0x10] sm:$0xff]
      %v366 = vld [vmem:[%s362 + $0x18] sm:$0xff]
      %v367 = vpack.c.bf16 %v355, %v355
      %v368 = vld [vmem:[#allocation8] sm:$0xff]
      %v369 = vld [vmem:[#allocation8 + $0x8] sm:$0xff]
      %v370 = vld [vmem:[#allocation8 + $0x10] sm:$0xff]
      %v371 = vld [vmem:[#allocation8 + $0x18] sm:$0xff]
      %v372 = vld [vmem:[#allocation8 + $0x20] sm:$0xff]
      %v373 = vld [vmem:[#allocation8 + $0x28] sm:$0xff]
      %v374 = vld [vmem:[#allocation8 + $0x30] sm:$0xff]
      %v375 = vld [vmem:[#allocation8 + $0x38] sm:$0xff]
      %v376 = vld [vmem:[#allocation8 + $0x40] sm:$0xff]
      %v377 = vld [vmem:[#allocation8 + $0x48] sm:$0xff]
      %v378 = vld [vmem:[#allocation8 + $0x50] sm:$0xff]
      %v379 = vld [vmem:[#allocation8 + $0x58] sm:$0xff]
      %v380 = vld [vmem:[#allocation8 + $0x60] sm:$0xff]
      %v381 = vld [vmem:[#allocation8 + $0x68] sm:$0xff]
      %v382 = vld [vmem:[#allocation8 + $0x70] sm:$0xff]
      %v383 = vld [vmem:[#allocation8 + $0x78] sm:$0xff]
      %v384 = vld [vmem:[#allocation8 + $0x80] sm:$0xff]
      %v385 = vld [vmem:[#allocation8 + $0x88] sm:$0xff]
      %v386 = vld [vmem:[#allocation8 + $0x90] sm:$0xff]
      %v387 = vld [vmem:[#allocation8 + $0x98] sm:$0xff]
      %v388 = vld [vmem:[#allocation8 + $0xa0] sm:$0xff]
      %v389 = vld [vmem:[#allocation8 + $0xa8] sm:$0xff]
      %v390 = vld [vmem:[#allocation8 + $0xb0] sm:$0xff]
      %v391 = vld [vmem:[#allocation8 + $0xb8] sm:$0xff]
      %v392 = vld [vmem:[#allocation8 + $0xc0] sm:$0xff]
      %v393 = vld [vmem:[#allocation8 + $0xc8] sm:$0xff]
      %v394 = vld [vmem:[#allocation8 + $0xd0] sm:$0xff]
      %v395 = vld [vmem:[#allocation8 + $0xd8] sm:$0xff]
      %v396 = vld [vmem:[#allocation8 + $0xe0] sm:$0xff]
      %v397 = vld [vmem:[#allocation8 + $0xe8] sm:$0xff]
      %v398 = vld [vmem:[#allocation8 + $0xf0] sm:$0xff]
      %v399 = vld [vmem:[#allocation8 + $0xf8] sm:$0xff]
      %v432 = vunpack.c.l.b16 %v368
      %v433 = vunpack.c.h.b16 %v368
      %v434 = vunpack.c.l.b16 %v369
      %v435 = vunpack.c.h.b16 %v369
      %v436 = vunpack.c.l.b16 %v370
      %v437 = vunpack.c.h.b16 %v370
      %v438 = vunpack.c.l.b16 %v371
      %v439 = vunpack.c.h.b16 %v371
      %v440 = vunpack.c.l.b16 %v372
      %v441 = vunpack.c.h.b16 %v372
      %v442 = vunpack.c.l.b16 %v373
      %v443 = vunpack.c.h.b16 %v373
      %v444 = vunpack.c.l.b16 %v374
      %v445 = vunpack.c.h.b16 %v374
      %v446 = vunpack.c.l.b16 %v375
      %v447 = vunpack.c.h.b16 %v375
      %v448 = vunpack.c.l.b16 %v376
      %v449 = vunpack.c.h.b16 %v376
      %v450 = vunpack.c.l.b16 %v377
      %v451 = vunpack.c.h.b16 %v377
      %v452 = vunpack.c.l.b16 %v378
      %v453 = vunpack.c.h.b16 %v378
      %v454 = vunpack.c.l.b16 %v379
      %v455 = vunpack.c.h.b16 %v379
      %v456 = vunpack.c.l.b16 %v380
      %v457 = vunpack.c.h.b16 %v380
      %v458 = vunpack.c.l.b16 %v381
      %v459 = vunpack.c.h.b16 %v381
      %v460 = vunpack.c.l.b16 %v382
      %v461 = vunpack.c.h.b16 %v382
      %v462 = vunpack.c.l.b16 %v383
      %v463 = vunpack.c.h.b16 %v383
      %v464 = vunpack.c.l.b16 %v384
      %v465 = vunpack.c.h.b16 %v384
      %v466 = vunpack.c.l.b16 %v385
      %v467 = vunpack.c.h.b16 %v385
      %v468 = vunpack.c.l.b16 %v386
      %v469 = vunpack.c.h.b16 %v386
      %v470 = vunpack.c.l.b16 %v387
      %v471 = vunpack.c.h.b16 %v387
      %v472 = vunpack.c.l.b16 %v388
      %v473 = vunpack.c.h.b16 %v388
      %v474 = vunpack.c.l.b16 %v389
      %v475 = vunpack.c.h.b16 %v389
      %v476 = vunpack.c.l.b16 %v390
      %v477 = vunpack.c.h.b16 %v390
      %v478 = vunpack.c.l.b16 %v391
      %v479 = vunpack.c.h.b16 %v391
      %v480 = vunpack.c.l.b16 %v392
      %v481 = vunpack.c.h.b16 %v392
      %v482 = vunpack.c.l.b16 %v393
      %v483 = vunpack.c.h.b16 %v393
      %v484 = vunpack.c.l.b16 %v394
      %v485 = vunpack.c.h.b16 %v394
      %v486 = vunpack.c.l.b16 %v395
      %v487 = vunpack.c.h.b16 %v395
      %v488 = vunpack.c.l.b16 %v396
      %v489 = vunpack.c.h.b16 %v396
      %v490 = vunpack.c.l.b16 %v397
      %v491 = vunpack.c.h.b16 %v397
      %v492 = vunpack.c.l.b16 %v398
      %v493 = vunpack.c.h.b16 %v398
      %v494 = vunpack.c.l.b16 %v399
      %v495 = vunpack.c.h.b16 %v399
      %v496 = vpack.c.b16 %v436, %v432
      %v497 = vpack.c.b16 %v437, %v433
      %v498 = vpack.c.b16 %v438, %v434
      %v499 = vpack.c.b16 %v439, %v435
      %v500 = vpack.c.b16 %v444, %v440
      %v501 = vpack.c.b16 %v445, %v441
      %v502 = vpack.c.b16 %v446, %v442
      %v503 = vpack.c.b16 %v447, %v443
      %v504 = vpack.c.b16 %v452, %v448
      %v505 = vpack.c.b16 %v453, %v449
      %v506 = vpack.c.b16 %v454, %v450
      %v507 = vpack.c.b16 %v455, %v451
      %v508 = vpack.c.b16 %v460, %v456
      %v509 = vpack.c.b16 %v461, %v457
      %v510 = vpack.c.b16 %v462, %v458
      %v511 = vpack.c.b16 %v463, %v459
      %v512 = vpack.c.b16 %v468, %v464
      %v513 = vpack.c.b16 %v469, %v465
      %v514 = vpack.c.b16 %v470, %v466
      %v515 = vpack.c.b16 %v471, %v467
      %v516 = vpack.c.b16 %v476, %v472
      %v517 = vpack.c.b16 %v477, %v473
      %v518 = vpack.c.b16 %v478, %v474
      %v519 = vpack.c.b16 %v479, %v475
      %v520 = vpack.c.b16 %v484, %v480
      %v521 = vpack.c.b16 %v485, %v481
      %v522 = vpack.c.b16 %v486, %v482
      %v523 = vpack.c.b16 %v487, %v483
      %v524 = vpack.c.b16 %v492, %v488
      %v525 = vpack.c.b16 %v493, %v489
      %v526 = vpack.c.b16 %v494, %v490
      %v527 = vpack.c.b16 %v495, %v491
      %560 = vmatprep.subr.bf16.mxu0 %v497
      %561 = vmatpush1.bf16.msra.mxu0 %v496
      %562 = vmatprep.subr.bf16.mxu0 %v501
      %563 = vmatpush1.bf16.msra.mxu0 %v500
      %564 = vmatprep.subr.bf16.mxu0 %v505
      %565 = vmatpush1.bf16.msra.mxu0 %v504
      %566 = vmatprep.subr.bf16.mxu0 %v509
      %567 = vmatpush1.bf16.msra.mxu0 %v508
      %568 = vmatprep.subr.bf16.mxu0 %v513
      %569 = vmatpush1.bf16.msra.mxu0 %v512
      %570 = vmatprep.subr.bf16.mxu0 %v517
      %571 = vmatpush1.bf16.msra.mxu0 %v516
      %572 = vmatprep.subr.bf16.mxu0 %v521
      %573 = vmatpush1.bf16.msra.mxu0 %v520
      %574 = vmatprep.subr.bf16.mxu0 %v525
      %575 = vmatpush1.bf16.msra.mxu0 %v524
      %576 = vmatprep.subr.bf16.mxu0 0
      %577 = vmatpush1.bf16.msra.mxu0 0
      %578 = vmatprep.subr.bf16.mxu0 0
      %579 = vmatpush1.bf16.msra.mxu0 0
      %580 = vmatprep.subr.bf16.mxu0 0
      %581 = vmatpush1.bf16.msra.mxu0 0
      %582 = vmatprep.subr.bf16.mxu0 0
      %583 = vmatpush1.bf16.msra.mxu0 0
      %584 = vmatprep.subr.bf16.mxu0 0
      %585 = vmatpush1.bf16.msra.mxu0 0
      %586 = vmatprep.subr.bf16.mxu0 0
      %587 = vmatpush1.bf16.msra.mxu0 0
      %588 = vmatprep.subr.bf16.mxu0 0
      %589 = vmatpush1.bf16.msra.mxu0 0
      %590 = vmatprep.subr.bf16.mxu0 0
      %591 = vmatpush1.bf16.msra.mxu0 0
      %592 = vmatprep.mubr.bf16.mxu0 0
      %593 = vmatmul.mubr.bf16.gmra.mrb[0].mxu0 %v367
      %v594 = vpop.f32.mrb[0].mxu0
      %v595 = vadd.f32 0.0, %v594
      %v596 = vpop.f32.mrb[0].mxu0
      %v597 = vadd.f32 0.0, %v596
      %v598 = vpop.f32.mrb[0].mxu0
      %v599 = vpop.f32.mrb[0].mxu0
      %600 = vdwg.mxu0
      %601 = vmatprep.subr.bf16.mxu0 %v499
      %602 = vmatpush1.bf16.msra.mxu0 %v498
      %603 = vmatprep.subr.bf16.mxu0 %v503
      %604 = vmatpush1.bf16.msra.mxu0 %v502
      %605 = vmatprep.subr.bf16.mxu0 %v507
      %606 = vmatpush1.bf16.msra.mxu0 %v506
      %607 = vmatprep.subr.bf16.mxu0 %v511
      %608 = vmatpush1.bf16.msra.mxu0 %v510
      %609 = vmatprep.subr.bf16.mxu0 %v515
      %610 = vmatpush1.bf16.msra.mxu0 %v514
      %611 = vmatprep.subr.bf16.mxu0 %v519
      %612 = vmatpush1.bf16.msra.mxu0 %v518
      %613 = vmatprep.subr.bf16.mxu0 %v523
      %614 = vmatpush1.bf16.msra.mxu0 %v522
      %615 = vmatprep.subr.bf16.mxu0 %v527
      %616 = vmatpush1.bf16.msra.mxu0 %v526
      %617 = vmatprep.subr.bf16.mxu0 0
      %618 = vmatpush1.bf16.msra.mxu0 0
      %619 = vmatprep.subr.bf16.mxu0 0
      %620 = vmatpush1.bf16.msra.mxu0 0
      %621 = vmatprep.subr.bf16.mxu0 0
      %622 = vmatpush1.bf16.msra.mxu0 0
      %623 = vmatprep.subr.bf16.mxu0 0
      %624 = vmatpush1.bf16.msra.mxu0 0
      %625 = vmatprep.subr.bf16.mxu0 0
      %626 = vmatpush1.bf16.msra.mxu0 0
      %627 = vmatprep.subr.bf16.mxu0 0
      %628 = vmatpush1.bf16.msra.mxu0 0
      %629 = vmatprep.subr.bf16.mxu0 0
      %630 = vmatpush1.bf16.msra.mxu0 0
      %631 = vmatprep.subr.bf16.mxu0 0
      %632 = vmatpush1.bf16.msra.mxu0 0
      %633 = vmatprep.mubr.bf16.mxu0 0
      %634 = vmatmul.mubr.bf16.gmra.mrb[0].mxu0 %v367
      %v635 = vpop.f32.mrb[0].mxu0
      %v636 = vadd.f32 0.0, %v635
      %v637 = vpop.f32.mrb[0].mxu0
      %v638 = vadd.f32 0.0, %v637
      %v639 = vpop.f32.mrb[0].mxu0
      %v640 = vpop.f32.mrb[0].mxu0
      %641 = vdwg.mxu0
      %v642 = vadd.f32 %v363, %v595
      %v643 = vadd.f32 %v364, %v597
      %v644 = vadd.f32 %v365, %v636
      %v645 = vadd.f32 %v366, %v638
      %v646 = vsub.f32 0.0, %v642
      %v647 = vmul.f32 %v646, 1.442695
      %v648 = vpow.pop %v647
      %v649 = vadd.f32 %v648, 1.0
      %v650 = vrcp.pop %v649
      %v651 = vsub.f32 0.0, %v643
      %v652 = vmul.f32 %v651, 1.442695
      %v653 = vpow.pop %v652
      %v654 = vadd.f32 %v653, 1.0
      %v655 = vrcp.pop %v654
      %v656 = vtanh.pop %v644
      %v657 = vsub.f32 0.0, %v645
      %v658 = vmul.f32 %v657, 1.442695
      %v659 = vpow.pop %v658
      %v660 = vadd.f32 %v659, 1.0
      %v661 = vrcp.pop %v660
      %v662 = vmul.f32 %v655, %v356
      %v663 = vmul.f32 %v650, %v656
      %v664 = vadd.f32 %v662, %v663
      %v665 = vtanh.pop %v664
      %v666 = vmul.f32 %v661, %v665
      %667 = vmax.xlane.f32.xlu0 %v666
      %v668 = vpop.xlane.xlu0 %667
      %v669 = vsub.f32 %v666, %v668
      %v670 = vmul.f32 %v669, 1.442695
      %v671 = vpow.pop %v670
      %672 = vadd.xlane.f32.xlu0 %v671
      %v673 = vpop.xlane.xlu0 %672
      %v674 = vlog2.pop %v673
      %v675 = vmul.f32 %v674, 0.6931472
      %v676 = vsub.f32 %v669, %v675
      %s677 = scalar_lea.vmem [#allocation9], %s357
      %678 = vst [vmem:[%s677] sm:$0xff] %v676
    $region34: #{tpu_custom_call.1} parent=1 // loop_footer
      %s354 = sadd.s32 1, %s350
    $region35: #{tpu_custom_call.1} parent=1 // loop_footer_branch
      %349 = sbr.rel target = $region31
    $region36: #{tpu_custom_call.1} parent=1 // loop_exit
      _
    // Predicated region
    $region37: #{tpu_custom_call.1} parent=1 // pred_check
      _
    $region38: #{tpu_custom_call.1} parent=1 // pred_check_branch
      %680 = sbr.rel (0) target = $region40
    $region39: #{tpu_custom_call.1} parent=1 // pred_region
      %s682 = ssub.s32 1024, 1024
      %683 = vsyncadd [#allocation5], %s682
      %s684 = sshll.u32 [#allocation9], 4
      %s685 = int_to_ptr.vmem [resolvable:$true] %s684
      %690 = dma.vmem_to_hbm [thread:$0]  %s685, 1024, %s4, [#allocation5], 128, 128, 8
    $region40: #{tpu_custom_call.1} parent=1 // pred_fallthru
      _
    // Predicated region
    $region41: #{tpu_custom_call.1} parent=1 // pred_check
      _
    $region42: #{tpu_custom_call.1} parent=1 // pred_check_branch
      %692 = sbr.rel (0) target = $region44
    $region43: #{tpu_custom_call.1} parent=1 // pred_region
      %693 = dma.done [#allocation5], 1024
    $region44: #{tpu_custom_call.1} parent=1 // pred_fallthru
      _
    %694 = vsyncpa [#allocation4], 1
    %695 = vsyncpa [#allocation7], 1
    %696 = vsyncpa [#allocation5], 1

</llo_original>
